<compile_context>
chip_gen: v7x
topology: tpu7x:2x2x1
jax: 0.10.0
libtpu: 0.0.40
codegen_flags: <defaults>
</compile_context>

<pallas_src>
import functools

import jax
import jax.numpy as jnp
from jax import lax
from jax.experimental import pallas as pl
from jax.experimental.pallas import tpu as pltpu


def _round_up(x: int, m: int) -> int:
    return (x + m - 1) // m * m


def _vmem_limit_bytes() -> int:
    """~75% of physical VMEM (96 MiB v5e/v6e, 48 MiB v7x); 48 MiB fallback."""
    try:
        cap = int(pltpu.get_tpu_info().vmem_capacity_bytes)
    except Exception:
        cap = 64 * 1024 * 1024
    return (cap * 3) // 4


def _resident_block_spec(shape):
    """Constant-index resident input; single-buffered when supported."""
    try:
        return pl.BlockSpec(shape, lambda i: (0,) * len(shape),
                            pipeline_mode=pl.Buffered(1))
    except Exception:
        return pl.BlockSpec(shape, lambda i: (0,) * len(shape))


def _token_embed_kernel(*refs, r: int, n_tb: int, tt: int, v_chunk: int,
                        has_dropout: bool):
    # refs (eval):     ids(1,TT) i32 | emb(V,D) | pos(T_pad,D) | out(TT,D)
    # refs (training): ids           | emb      | pos          | mask(TT,D) | out
    if has_dropout:
        ids_ref, emb_ref, pos_ref, mask_ref, out_ref = refs
    else:
        ids_ref, emb_ref, pos_ref, out_ref = refs
        mask_ref = None

    ids = ids_ref[...]                                  # (1, TT) int32
    v, d = emb_ref.shape

    # ---- embedding row gather: one-hot (Vc, TT)^T @ (Vc, D) on the MXU ------
    # Chunked over V so the one-hot tile stays bounded for larger vocabs.
    # TODO(synk): for production vocabularies whose table cannot stay resident
    # in VMEM (esp. v7x, 64 MiB), switch the table to memory_space=pl.ANY and
    # use a manual pltpu.make_async_copy multi-row DMA gather instead.
    n_chunks = (v + v_chunk - 1) // v_chunk
    gathered = None
    for c in range(n_chunks):                           # static, unrolled
        v0 = c * v_chunk
        vc = min(v, v0 + v_chunk) - v0
        emb_c = emb_ref[v0:v0 + vc, :]                  # static slice of resident table
        onehot_t = (lax.broadcasted_iota(jnp.int32, (vc, tt), 0) + v0 == ids)
        onehot_t = onehot_t.astype(emb_c.dtype)         # bf16 table -> single-pass MXU
        part = lax.dot_general(
            onehot_t, emb_c,
            dimension_numbers=(((0,), (0,)), ((), ())),
            preferred_element_type=jnp.float32,
            precision=lax.Precision.HIGHEST)            # exact gather for f32 tables
        gathered = part if gathered is None else gathered + part

    # ---- learned positional embedding (table resident in VMEM) --------------
    if n_tb == 1:
        pos = pos_ref[...].astype(jnp.float32)          # (T_pad, D)
        if r > 1:                                       # block spans r whole batch rows
            pos = jnp.broadcast_to(pos[None], (r,) + pos.shape).reshape(tt, d)
    else:                                               # block is a slice of one row
        start = pl.multiple_of((pl.program_id(0) % n_tb) * tt, 8)
        pos = pos_ref[pl.ds(start, tt), :].astype(jnp.float32)

    x = gathered + pos                                  # f32 add (v5e: no bf16 VALU)

    # ---- dropout (training only): pre-scaled host-generated keep mask -------
    if has_dropout:
        x = x * mask_ref[...]

    out_ref[...] = x.astype(out_ref.dtype)


def token_embedding(ids, emb_table, pos_table, *, dropout_p: float = 0.01,
                    training: bool = False, seed: int = 0,
                    token_block: int = 1024, v_chunk: int = 512):
    """ids: (B, T) int; emb_table: (V, D); pos_table: (MAX_LEN, D) -> (B, T, D).

    Equivalent to: dropout(emb_table[ids] + pos_table[None, :T, :]).
    """
    b, t = ids.shape
    v, d = emb_table.shape
    max_len, d2 = pos_table.shape
    assert d == d2 and t <= max_len
    assert 0.0 <= dropout_p <= 1.0 and v_chunk >= 8

    has_dropout = bool(training) and dropout_p > 0.0
    if has_dropout and dropout_p >= 1.0:                # p == 1: everything dropped
        return jnp.zeros((b, t, d), emb_table.dtype)

    # ---- choose the flat token-block size TT --------------------------------
    t_row = _round_up(t, 8)
    if t_row <= token_block:
        # Merge r whole batch rows per block (r divides B) so each grid step
        # writes a large (TT, D) slab even for short sequences.
        r, cap = 1, max(1, token_block // t_row)
        for cand in range(min(b, cap), 0, -1):
            if b % cand == 0:
                r = cand
                break
        tt, t_pad, n_tb = r * t_row, t_row, 1
    else:
        r, tt = 1, token_block
        t_pad = _round_up(t, tt)
        n_tb = t_pad // tt
    n_blocks = (b * t_pad) // tt

    # ---- host-side data prep -------------------------------------------------
    ids_p = jnp.pad(ids.astype(jnp.int32), ((0, 0), (0, t_pad - t)))  # pad w/ 0 (valid row)
    ids_blk = ids_p.reshape(n_blocks, tt)

    pos_use = pos_table[:t]
    if t_pad > t:
        pos_use = jnp.pad(pos_use, ((0, t_pad - t), (0, 0)))

    kernel = functools.partial(_token_embed_kernel, r=r, n_tb=n_tb, tt=tt,
                               v_chunk=int(v_chunk), has_dropout=has_dropout)

    in_specs = [
        # token ids for this block (last dim == full dim -> dense)
        pl.BlockSpec((1, tt), lambda i: (i, 0)),
        # full embedding table, resident in VMEM, single-buffered
        _resident_block_spec((v, d)),
        # full (padded) positional rows, resident in VMEM, single-buffered
        _resident_block_spec((t_pad, d)),
    ]
    args = [ids_blk, emb_table, pos_use]

    if has_dropout:
        # Inverted-dropout keep mask, pre-scaled by 1/(1-p), generated host-side
        # so it runs on TPU and in interpret mode alike.
        keep = jax.random.bernoulli(jax.random.PRNGKey(seed), 1.0 - dropout_p,
                                    (n_blocks * tt, d))
        mask = keep.astype(jnp.float32) * jnp.float32(1.0 / (1.0 - dropout_p))
        in_specs.append(pl.BlockSpec((tt, d), lambda i: (i, 0)))
        args.append(mask)

    out = pl.pallas_call(
        kernel,
        out_shape=jax.ShapeDtypeStruct((n_blocks * tt, d), emb_table.dtype),
        grid=(n_blocks,),
        in_specs=in_specs,
        out_specs=pl.BlockSpec((tt, d), lambda i: (i, 0)),
        compiler_params=pltpu.CompilerParams(
            dimension_semantics=("parallel",),          # megacore-shardable axis
            vmem_limit_bytes=_vmem_limit_bytes(),
        ),
    )(*args)

    return out.reshape(b, t_pad, d)[:, :t, :]


if __name__ == "__main__":
    # Small, module-consistent shapes.
    NUM_EMBED = 64     # num_embed
    EMBED_DIM = 128    # embed_dim (multiple of 128 -> lane-dense)
    MAX_LEN = 16       # max_len
    B, T = 2, 8

    key = jax.random.PRNGKey(0)
    k_ids, k_emb, k_pos = jax.random.split(key, 3)

    ids = jax.random.randint(k_ids, (B, T), 0, NUM_EMBED, dtype=jnp.int32)
    emb_table = jax.random.normal(k_emb, (NUM_EMBED, EMBED_DIM), dtype=jnp.float32)
    pos_table = 0.02 * jax.random.normal(k_pos, (MAX_LEN, EMBED_DIM), dtype=jnp.float32)
    # Keep table values bf16-representable so the MXU one-hot gather is bit-exact
    # under any f32-matmul emulation mode (keeps the check tight).
    emb_table = emb_table.astype(jnp.bfloat16).astype(jnp.float32)
    pos_table = pos_table.astype(jnp.bfloat16).astype(jnp.float32)

    ref = emb_table[ids] + pos_table[None, :T, :]

    # Eval mode (dropout = identity, matches torch .eval()).
    out = jax.block_until_ready(
        token_embedding(ids, emb_table, pos_table, dropout_p=0.01, training=False))
    assert out.shape == (B, T, EMBED_DIM)
    assert jnp.allclose(out, ref, atol=1e-6, rtol=1e-6), \
        float(jnp.max(jnp.abs(out - ref)))

    # Eval mode again, exercising the chunked-V gather path (V=64, chunks of 32).
    out_c = jax.block_until_ready(
        token_embedding(ids, emb_table, pos_table, training=False, v_chunk=32))
    assert jnp.allclose(out_c, ref, atol=1e-6, rtol=1e-6)

    # Training mode: every output element must be 0 or ref * 1/(1-p).
    p = 0.25
    out_tr = jax.block_until_ready(
        token_embedding(ids, emb_table, pos_table, dropout_p=p, training=True,
                        seed=123))
    assert out_tr.shape == (B, T, EMBED_DIM)
    scale = 1.0 / (1.0 - p)
    ok = (jnp.isclose(out_tr, 0.0, atol=1e-6)
          | jnp.isclose(out_tr, ref * scale, atol=1e-5, rtol=1e-5))
    assert bool(jnp.all(ok))
    assert bool(jnp.all(jnp.isfinite(out_tr)))

    print("KERNEL_OK")
</pallas_src>

<mosaic_0001>
module attributes {stable_mosaic.version = 11 : i64} {
  func.func @_token_embed_kernel(%arg0: i32, %arg1: memref<1x16xi32, #tpu.memory_space<vmem>>, %arg2: memref<64x128xf32, #tpu.memory_space<vmem>>, %arg3: memref<8x128xf32, #tpu.memory_space<vmem>>, %arg4: memref<16x128xf32, #tpu.memory_space<vmem>>) attributes {dimension_semantics = [#tpu.dimension_semantics<parallel>], iteration_bounds = array<i64: 1>, scalar_prefetch = 0 : i64, scratch_operands = 0 : i64, tpu.core_type = #tpu.core_type<tc>, window_params = [{transform_indices = @transform_0, window_bounds = array<i64: 1, 16>}, {pipeline_mode = #tpu.pipeline_mode<synchronous>, transform_indices = @transform_1, window_bounds = array<i64: 64, 128>}, {pipeline_mode = #tpu.pipeline_mode<synchronous>, transform_indices = @transform_2, window_bounds = array<i64: 8, 128>}, {transform_indices = @transform_3, window_bounds = array<i64: 16, 128>}]} {
    %c0 = arith.constant 0 : index
    %c0_0 = arith.constant 0 : index
    %0 = vector.load %arg1[%c0, %c0_0] : memref<1x16xi32, #tpu.memory_space<vmem>>, vector<1x16xi32>
    %c0_1 = arith.constant 0 : index
    %c0_2 = arith.constant 0 : index
    %1 = vector.load %arg2[%c0_1, %c0_2] : memref<64x128xf32, #tpu.memory_space<vmem>>, vector<64x128xf32>
    %2 = tpu.iota {dimensions = array<i32: 0>} : vector<64x16xi32>
    %c0_i32 = arith.constant 0 : i32
    %3 = vector.broadcast %c0_i32 : i32 to vector<64x16xi32>
    %4 = arith.addi %2, %3 : vector<64x16xi32>
    %5 = vector.broadcast %0 : vector<1x16xi32> to vector<64x16xi32>
    %6 = arith.cmpi eq, %4, %5 : vector<64x16xi32>
    %7 = arith.extui %6 : vector<64x16xi1> to vector<64x16xi32>
    %8 = arith.sitofp %7 : vector<64x16xi32> to vector<64x16xf32>
    %cst = arith.constant dense<0.000000e+00> : vector<16x128xf32>
    %9 = tpu.matmul %8, %1, %cst {dimension_numbers = #tpu.dot_dimension_numbers<[0], [0], [1], [1], [0, 1, 1, 1], [], []>, precision = #tpu.contract_precision<fp32>} : vector<64x16xf32>, vector<64x128xf32>, vector<16x128xf32> -> vector<16x128xf32>
    %c0_3 = arith.constant 0 : index
    %c0_4 = arith.constant 0 : index
    %10 = vector.load %arg3[%c0_3, %c0_4] : memref<8x128xf32, #tpu.memory_space<vmem>>, vector<8x128xf32>
    %11 = vector.shape_cast %10 : vector<8x128xf32> to vector<1x8x128xf32>
    %12 = vector.shape_cast %11 : vector<1x8x128xf32> to vector<1x8x128xf32>
    %13 = vector.broadcast %12 : vector<1x8x128xf32> to vector<2x8x128xf32>
    %14 = vector.shape_cast %13 : vector<2x8x128xf32> to vector<16x128xf32>
    %15 = arith.addf %9, %14 : vector<16x128xf32>
    %c0_5 = arith.constant 0 : index
    %c0_6 = arith.constant 0 : index
    %16 = vector.load %arg4[%c0_5, %c0_6] : memref<16x128xf32, #tpu.memory_space<vmem>>, vector<16x128xf32>
    tpu.vector_store %arg4[%c0_5, %c0_6], %15 {strides = array<i32>} : memref<16x128xf32, #tpu.memory_space<vmem>>, vector<16x128xf32>,
    return
  }
  func.func @transform_0(%arg0: i32) -> (i32, i32) {
    %c0_i32 = arith.constant 0 : i32
    %c0_i32_0 = arith.constant 0 : i32
    return %arg0, %c0_i32 : i32, i32
  }
  func.func @transform_1(%arg0: i32) -> (i32, i32) {
    %c0_i32 = arith.constant 0 : i32
    %c0_i32_0 = arith.constant 0 : i32
    %c0_i32_1 = arith.constant 0 : i32
    return %c0_i32, %c0_i32_0 : i32, i32
  }
  func.func @transform_2(%arg0: i32) -> (i32, i32) {
    %c0_i32 = arith.constant 0 : i32
    %c0_i32_0 = arith.constant 0 : i32
    %c0_i32_1 = arith.constant 0 : i32
    return %c0_i32, %c0_i32_0 : i32, i32
  }
  func.func @transform_3(%arg0: i32) -> (i32, i32) {
    %c0_i32 = arith.constant 0 : i32
    %c0_i32_0 = arith.constant 0 : i32
    return %arg0, %c0_i32 : i32, i32
  }
}

</mosaic_0001>

<llo_original>
// kernel: tpu_custom_call.1
$region0: #{tpu_custom_call.1}
  #allocation0 [shape = 'u32[]', space=smem, size = 0x4, offset = 0x4, fixed_abs, tag = 'smem constant byte address 0x4 - core index']
  #allocation1 [shape = 'u32[144,128]{1,0:T(1,128)}', space=vmem, size = 0x12000, scoped, tag = 'internal scratch']
  %s0 = inlined_call_operand.hbm [shape: s32[1,16], index: 0, kind: input, shape index: {}]
  %s1 = inlined_call_operand.hbm [shape: f32[64,128], index: 1, kind: input, shape index: {}]
  %s2 = inlined_call_operand.hbm [shape: f32[8,128], index: 2, kind: input, shape index: {}]
  %s3 = inlined_call_operand.hbm [shape: f32[16,128], index: 3, kind: output, shape index: {}]
  %s4 = sld [smem:[#allocation0]]
  $region34: #{tpu_custom_call.1} parent=0
    _
  %s6 = ssub.s32 1, %s4
  %s7 = scalar_select 0, %s6, %s4
  $region1: #{tpu_custom_call.1} parent=0
    #allocation2 [shape = 'u8[512]{0}', space=vmem, size = 0x400, scoped, tag = 'input window, operand 0, single buffered']
    #allocation3 [shape = 's32[1]{0}', space=sflag, size = 0x4, scoped, tag = 'scoped memory for tpu_custom_call.1']
    #allocation4 [shape = 's32[1]{0}', space=sflag, size = 0x4, scoped, tag = 'scoped memory for tpu_custom_call.1']
    #allocation5 [shape = 'u8[32768]{0}', space=vmem, size = 0x8000, scoped, tag = 'input window, operand 1, single buffered']
    #allocation6 [shape = 's32[1]{0}', space=sflag, size = 0x4, scoped, tag = 'scoped memory for tpu_custom_call.1']
    #allocation7 [shape = 'u8[4096]{0}', space=vmem, size = 0x1000, scoped, tag = 'input window, operand 2, single buffered']
    #allocation8 [shape = 'u8[8192]{0}', space=vmem, size = 0x2000, scoped, tag = 'output window, operand 0, single buffered']
    %8 = vsyncpa [#allocation3], 0
    %9 = vsyncpa [#allocation6], 0
    %10 = vsyncpa [#allocation4], 0
    // Predicated region
    $region2: #{tpu_custom_call.1} parent=1 // pred_check
      _
    $region3: #{tpu_custom_call.1} parent=1 // pred_check_branch
      %12 = sbr.rel (0) target = $region5
    $region4: #{tpu_custom_call.1} parent=1 // pred_region
      %s14 = ssub.s32 16, 16
      %15 = vsyncadd [#allocation3], %s14
      %s17 = sshll.u32 [#allocation2], 4
      %s18 = int_to_ptr.vmem [resolvable:$true] %s17
      %20 = dma.hbm_to_vmem [thread:$0]  %s0, 16, %s18, [#allocation3]
    $region5: #{tpu_custom_call.1} parent=1 // pred_fallthru
      _
    // Predicated region
    $region6: #{tpu_custom_call.1} parent=1 // pred_check
      _
    $region7: #{tpu_custom_call.1} parent=1 // pred_check_branch
      %22 = sbr.rel (0) target = $region9
    $region8: #{tpu_custom_call.1} parent=1 // pred_region
      %s24 = ssub.s32 1024, 1024
      %25 = vsyncadd [#allocation6], %s24
      %s26 = sshll.u32 [#allocation5], 4
      %s27 = int_to_ptr.vmem [resolvable:$true] %s26
      %32 = dma.hbm_to_vmem [thread:$0]  %s1, 1024, %s27, [#allocation6], 128, 128, 8
    $region9: #{tpu_custom_call.1} parent=1 // pred_fallthru
      _
    // Predicated region
    $region10: #{tpu_custom_call.1} parent=1 // pred_check
      _
    $region11: #{tpu_custom_call.1} parent=1 // pred_check_branch
      %34 = sbr.rel (0) target = $region13
    $region12: #{tpu_custom_call.1} parent=1 // pred_region
      %s36 = ssub.s32 128, 128
      %37 = vsyncadd [#allocation6], %s36
      %s39 = sshll.u32 [#allocation7], 4
      %s40 = int_to_ptr.vmem [resolvable:$true] %s39
      %42 = dma.hbm_to_vmem [thread:$0]  %s2, 128, %s40, [#allocation6]
    $region13: #{tpu_custom_call.1} parent=1 // pred_fallthru
      _
    // Predicated region
    $region14: #{tpu_custom_call.1} parent=1 // pred_check
      _
    $region15: #{tpu_custom_call.1} parent=1 // pred_check_branch
      %44 = sbr.rel (0) target = $region17
    $region16: #{tpu_custom_call.1} parent=1 // pred_region
      %45 = dma.done [#allocation3], 16
    $region17: #{tpu_custom_call.1} parent=1 // pred_fallthru
      _
    // Predicated region
    $region18: #{tpu_custom_call.1} parent=1 // pred_check
      _
    $region19: #{tpu_custom_call.1} parent=1 // pred_check_branch
      %47 = sbr.rel (0) target = $region21
    $region20: #{tpu_custom_call.1} parent=1 // pred_region
      %48 = dma.done [#allocation6], 1024
    $region21: #{tpu_custom_call.1} parent=1 // pred_fallthru
      _
    // Predicated region
    $region22: #{tpu_custom_call.1} parent=1 // pred_check
      _
    $region23: #{tpu_custom_call.1} parent=1 // pred_check_branch
      %50 = sbr.rel (0) target = $region25
    $region24: #{tpu_custom_call.1} parent=1 // pred_region
      %51 = dma.done [#allocation6], 128
    $region25: #{tpu_custom_call.1} parent=1 // pred_fallthru
      _
    %v52 = vld [vmem:[#allocation2] sm:$0x1]
    %v53 = vld [vmem:[#allocation5] sm:$0xff]
    %v54 = vld [vmem:[#allocation5 + $0x8] sm:$0xff]
    %v55 = vld [vmem:[#allocation5 + $0x10] sm:$0xff]
    %v56 = vld [vmem:[#allocation5 + $0x18] sm:$0xff]
    %v57 = vld [vmem:[#allocation5 + $0x20] sm:$0xff]
    %v58 = vld [vmem:[#allocation5 + $0x28] sm:$0xff]
    %v59 = vld [vmem:[#allocation5 + $0x30] sm:$0xff]
    %v60 = vld [vmem:[#allocation5 + $0x38] sm:$0xff]
    %v61 = vlaneseq
    %v62 = vshrl.u32 %v61, 7
    %v63 = vadd.s32 %v62, 8
    %v64 = vadd.s32 %v62, 16
    %v65 = vadd.s32 %v62, 24
    %v66 = vadd.s32 %v62, 32
    %v67 = vadd.s32 %v62, 40
    %v68 = vadd.s32 %v62, 48
    %v69 = vadd.s32 %v62, 56
    %v70 = vlaneseq
    %v71 = vshrl.u32 %v70, 7
    %v72 = vsub.s32 0, %v71
    %v73 = vrot.slane %v52, %v72
    %vm74 = vcmp.eq.s32.totalorder %v62, %v73
    %vm75 = vcmp.eq.s32.totalorder %v63, %v73
    %vm76 = vcmp.eq.s32.totalorder %v64, %v73
    %vm77 = vcmp.eq.s32.totalorder %v65, %v73
    %vm78 = vcmp.eq.s32.totalorder %v66, %v73
    %vm79 = vcmp.eq.s32.totalorder %v67, %v73
    %vm80 = vcmp.eq.s32.totalorder %v68, %v73
    %vm81 = vcmp.eq.s32.totalorder %v69, %v73
    %v82 = vsel %vm74, 1, 0
    %v83 = vsel %vm75, 1, 0
    %v84 = vsel %vm76, 1, 0
    %v85 = vsel %vm77, 1, 0
    %v86 = vsel %vm78, 1, 0
    %v87 = vsel %vm79, 1, 0
    %v88 = vsel %vm80, 1, 0
    %v89 = vsel %vm81, 1, 0
    %v90 = vcvt.s32.f32 %v82
    %v91 = vcvt.s32.f32 %v83
    %v92 = vcvt.s32.f32 %v84
    %v93 = vcvt.s32.f32 %v85
    %v94 = vcvt.s32.f32 %v86
    %v95 = vcvt.s32.f32 %v87
    %v96 = vcvt.s32.f32 %v88
    %v97 = vcvt.s32.f32 %v89
    %v98 = vld [vmem:[#allocation7] sm:$0xff]
    %99 = vxpose.xlu0.b32.start [1/16] %v90, 128
    %100 = vxpose.xlu0.b32.cont [2/16] %v91, 128
    %101 = vxpose.xlu0.b32.cont [3/16] %v92, 128
    %102 = vxpose.xlu0.b32.cont [4/16] %v93, 128
    %103 = vxpose.xlu0.b32.cont [5/16] %v94, 128
    %104 = vxpose.xlu0.b32.cont [6/16] %v95, 128
    %105 = vxpose.xlu0.b32.cont [7/16] %v96, 128
    %106 = vxpose.xlu0.b32.cont [8/16] %v97, 128
    %107 = vxpose.xlu0.b32.cont [9/16] 0.0, 128
    %108 = vxpose.xlu0.b32.cont [10/16] 0.0, 128
    %109 = vxpose.xlu0.b32.cont [11/16] 0.0, 128
    %110 = vxpose.xlu0.b32.cont [12/16] 0.0, 128
    %111 = vxpose.xlu0.b32.cont [13/16] 0.0, 128
    %112 = vxpose.xlu0.b32.cont [14/16] 0.0, 128
    %113 = vxpose.xlu0.b32.cont [15/16] 0.0, 128
    %114 = vxpose.xlu0.b32.end [16/16] 0.0, 128
    %v115 = vpop.trf.xlu0
    %v116 = vpop.trf.xlu0
    %v117 = vpop.trf.xlu0
    %v118 = vpop.trf.xlu0
    %v119 = vpop.trf.xlu0
    %v120 = vpop.trf.xlu0
    %v121 = vpop.trf.xlu0
    %v122 = vpop.trf.xlu0
    %v123 = vpop.trf.xlu0
    %v124 = vpop.trf.xlu0
    %v125 = vpop.trf.xlu0
    %v126 = vpop.trf.xlu0
    %v127 = vpop.trf.xlu0
    %v128 = vpop.trf.xlu0
    %v129 = vpop.trf.xlu0
    %v130 = vpop.trf.xlu0
    %vm131 = vcmask 523264
    %v133 = vsel %vm131, %v115, 0
    %v136 = vsel %vm131, %v116, 0
    %138 = vmatprep.subr.mxu0 0.0
    %v139 = vand.u32 %v53, 4294901760
    %140 = vmatpush1.msra.mxu0 %v139
    %141 = vmatprep.subr.mxu0 0.0
    %v142 = vand.u32 %v54, 4294901760
    %143 = vmatpush1.msra.mxu0 %v142
    %144 = vmatprep.subr.mxu0 0.0
    %v145 = vand.u32 %v55, 4294901760
    %146 = vmatpush1.msra.mxu0 %v145
    %147 = vmatprep.subr.mxu0 0.0
    %v148 = vand.u32 %v56, 4294901760
    %149 = vmatpush1.msra.mxu0 %v148
    %150 = vmatprep.subr.mxu0 0.0
    %v151 = vand.u32 %v57, 4294901760
    %152 = vmatpush1.msra.mxu0 %v151
    %153 = vmatprep.subr.mxu0 0.0
    %v154 = vand.u32 %v58, 4294901760
    %155 = vmatpush1.msra.mxu0 %v154
    %156 = vmatprep.subr.mxu0 0.0
    %v157 = vand.u32 %v59, 4294901760
    %158 = vmatpush1.msra.mxu0 %v157
    %159 = vmatprep.subr.mxu0 0.0
    %v160 = vand.u32 %v60, 4294901760
    %161 = vmatpush1.msra.mxu0 %v160
    %162 = vmatprep.subr.mxu0 0.0
    %163 = vmatpush1.msra.mxu0 0.0
    %164 = vmatprep.subr.mxu0 0.0
    %165 = vmatpush1.msra.mxu0 0.0
    %166 = vmatprep.subr.mxu0 0.0
    %167 = vmatpush1.msra.mxu0 0.0
    %168 = vmatprep.subr.mxu0 0.0
    %169 = vmatpush1.msra.mxu0 0.0
    %170 = vmatprep.subr.mxu0 0.0
    %171 = vmatpush1.msra.mxu0 0.0
    %172 = vmatprep.subr.mxu0 0.0
    %173 = vmatpush1.msra.mxu0 0.0
    %174 = vmatprep.subr.mxu0 0.0
    %175 = vmatpush1.msra.mxu0 0.0
    %176 = vmatprep.subr.mxu0 0.0
    %177 = vmatpush1.msra.mxu0 0.0
    %178 = vmatprep.subr.mxu0 0.0
    %179 = vmatpush1.msra.mxu0 0.0
    %180 = vmatprep.subr.mxu0 0.0
    %181 = vmatpush1.msra.mxu0 0.0
    %182 = vmatprep.subr.mxu0 0.0
    %183 = vmatpush1.msra.mxu0 0.0
    %184 = vmatprep.subr.mxu0 0.0
    %185 = vmatpush1.msra.mxu0 0.0
    %186 = vmatprep.subr.mxu0 0.0
    %187 = vmatpush1.msra.mxu0 0.0
    %188 = vmatprep.subr.mxu0 0.0
    %189 = vmatpush1.msra.mxu0 0.0
    %190 = vmatprep.subr.mxu0 0.0
    %191 = vmatpush1.msra.mxu0 0.0
    %192 = vmatprep.subr.mxu0 0.0
    %193 = vmatpush1.msra.mxu0 0.0
    %194 = vmatprep.subr.mxu0 0.0
    %195 = vmatpush1.msra.mxu0 0.0
    %196 = vmatprep.subr.mxu0 0.0
    %197 = vmatpush1.msra.mxu0 0.0
    %198 = vmatprep.subr.mxu0 0.0
    %199 = vmatpush1.msra.mxu0 0.0
    %200 = vmatprep.subr.mxu0 0.0
    %201 = vmatpush1.msra.mxu0 0.0
    %202 = vmatprep.subr.mxu0 0.0
    %203 = vmatpush1.msra.mxu0 0.0
    %204 = vmatprep.subr.mxu0 0.0
    %205 = vmatpush1.msra.mxu0 0.0
    %206 = vmatprep.subr.mxu0 0.0
    %207 = vmatpush1.msra.mxu0 0.0
    %208 = vmatprep.subr.mxu0 0.0
    %209 = vmatpush1.msra.mxu0 0.0
    %210 = vmatprep.mubr.f32.mxu0 0.0
    %v211 = vand.u32 %v133, 4294901760
    %v212 = vsub.f32 %v133, %v211
    %v213 = vand.u32 %v212, 4294901760
    %v214 = vsub.f32 %v212, %v213
    %v215 = vand.u32 %v214, 4294901760
    %216 = vmatmul.mubr.f32.gmra.mrb[0].mxu0 %v215
    %v217 = vpop.f32.mrb[0].mxu0
    %v218 = vadd.f32 %v98, %v217
    %v219 = vpop.f32.mrb[0].mxu0
    %220 = vmatprep.mubr.f32.mxu0 0.0
    %v221 = vand.u32 %v136, 4294901760
    %v222 = vsub.f32 %v136, %v221
    %v223 = vand.u32 %v222, 4294901760
    %v224 = vsub.f32 %v222, %v223
    %v225 = vand.u32 %v224, 4294901760
    %226 = vmatmul.mubr.f32.gmra.mrb[0].mxu0 %v225
    %v227 = vpop.f32.mrb[0].mxu0
    %v228 = vadd.f32 %v98, %v227
    %v229 = vpop.f32.mrb[0].mxu0
    %230 = vdwg.mxu0
    %231 = vmatprep.subr.mxu0 0.0
    %v232 = vand.u32 %v53, 4294901760
    %v233 = vsub.f32 %v53, %v232
    %v234 = vand.u32 %v233, 4294901760
    %v235 = vsub.f32 %v233, %v234
    %v236 = vand.u32 %v235, 4294901760
    %237 = vmatpush1.msra.mxu0 %v236
    %238 = vmatprep.subr.mxu0 0.0
    %v239 = vand.u32 %v54, 4294901760
    %v240 = vsub.f32 %v54, %v239
    %v241 = vand.u32 %v240, 4294901760
    %v242 = vsub.f32 %v240, %v241
    %v243 = vand.u32 %v242, 4294901760
    %244 = vmatpush1.msra.mxu0 %v243
    %245 = vmatprep.subr.mxu0 0.0
    %v246 = vand.u32 %v55, 4294901760
    %v247 = vsub.f32 %v55, %v246
    %v248 = vand.u32 %v247, 4294901760
    %v249 = vsub.f32 %v247, %v248
    %v250 = vand.u32 %v249, 4294901760
    %251 = vmatpush1.msra.mxu0 %v250
    %252 = vmatprep.subr.mxu0 0.0
    %v253 = vand.u32 %v56, 4294901760
    %v254 = vsub.f32 %v56, %v253
    %v255 = vand.u32 %v254, 4294901760
    %v256 = vsub.f32 %v254, %v255
    %v257 = vand.u32 %v256, 4294901760
    %258 = vmatpush1.msra.mxu0 %v257
    %259 = vmatprep.subr.mxu0 0.0
    %v260 = vand.u32 %v57, 4294901760
    %v261 = vsub.f32 %v57, %v260
    %v262 = vand.u32 %v261, 4294901760
    %v263 = vsub.f32 %v261, %v262
    %v264 = vand.u32 %v263, 4294901760
    %265 = vmatpush1.msra.mxu0 %v264
    %266 = vmatprep.subr.mxu0 0.0
    %v267 = vand.u32 %v58, 4294901760
    %v268 = vsub.f32 %v58, %v267
    %v269 = vand.u32 %v268, 4294901760
    %v270 = vsub.f32 %v268, %v269
    %v271 = vand.u32 %v270, 4294901760
    %272 = vmatpush1.msra.mxu0 %v271
    %273 = vmatprep.subr.mxu0 0.0
    %v274 = vand.u32 %v59, 4294901760
    %v275 = vsub.f32 %v59, %v274
    %v276 = vand.u32 %v275, 4294901760
    %v277 = vsub.f32 %v275, %v276
    %v278 = vand.u32 %v277, 4294901760
    %279 = vmatpush1.msra.mxu0 %v278
    %280 = vmatprep.subr.mxu0 0.0
    %v281 = vand.u32 %v60, 4294901760
    %v282 = vsub.f32 %v60, %v281
    %v283 = vand.u32 %v282, 4294901760
    %v284 = vsub.f32 %v282, %v283
    %v285 = vand.u32 %v284, 4294901760
    %286 = vmatpush1.msra.mxu0 %v285
    %287 = vmatprep.subr.mxu0 0.0
    %288 = vmatpush1.msra.mxu0 0.0
    %289 = vmatprep.subr.mxu0 0.0
    %290 = vmatpush1.msra.mxu0 0.0
    %291 = vmatprep.subr.mxu0 0.0
    %292 = vmatpush1.msra.mxu0 0.0
    %293 = vmatprep.subr.mxu0 0.0
    %294 = vmatpush1.msra.mxu0 0.0
    %295 = vmatprep.subr.mxu0 0.0
    %296 = vmatpush1.msra.mxu0 0.0
    %297 = vmatprep.subr.mxu0 0.0
    %298 = vmatpush1.msra.mxu0 0.0
    %299 = vmatprep.subr.mxu0 0.0
    %300 = vmatpush1.msra.mxu0 0.0
    %301 = vmatprep.subr.mxu0 0.0
    %302 = vmatpush1.msra.mxu0 0.0
    %303 = vmatprep.subr.mxu0 0.0
    %304 = vmatpush1.msra.mxu0 0.0
    %305 = vmatprep.subr.mxu0 0.0
    %306 = vmatpush1.msra.mxu0 0.0
    %307 = vmatprep.subr.mxu0 0.0
    %308 = vmatpush1.msra.mxu0 0.0
    %309 = vmatprep.subr.mxu0 0.0
    %310 = vmatpush1.msra.mxu0 0.0
    %311 = vmatprep.subr.mxu0 0.0
    %312 = vmatpush1.msra.mxu0 0.0
    %313 = vmatprep.subr.mxu0 0.0
    %314 = vmatpush1.msra.mxu0 0.0
    %315 = vmatprep.subr.mxu0 0.0
    %316 = vmatpush1.msra.mxu0 0.0
    %317 = vmatprep.subr.mxu0 0.0
    %318 = vmatpush1.msra.mxu0 0.0
    %319 = vmatprep.subr.mxu0 0.0
    %320 = vmatpush1.msra.mxu0 0.0
    %321 = vmatprep.subr.mxu0 0.0
    %322 = vmatpush1.msra.mxu0 0.0
    %323 = vmatprep.subr.mxu0 0.0
    %324 = vmatpush1.msra.mxu0 0.0
    %325 = vmatprep.subr.mxu0 0.0
    %326 = vmatpush1.msra.mxu0 0.0
    %327 = vmatprep.subr.mxu0 0.0
    %328 = vmatpush1.msra.mxu0 0.0
    %329 = vmatprep.subr.mxu0 0.0
    %330 = vmatpush1.msra.mxu0 0.0
    %331 = vmatprep.subr.mxu0 0.0
    %332 = vmatpush1.msra.mxu0 0.0
    %333 = vmatprep.subr.mxu0 0.0
    %334 = vmatpush1.msra.mxu0 0.0
    %335 = vmatprep.mubr.f32.mxu0 0.0
    %v336 = vand.u32 %v133, 4294901760
    %337 = vmatmul.mubr.f32.gmra.mrb[0].mxu0 %v336
    %v338 = vpop.f32.mrb[0].mxu0
    %v339 = vadd.f32 %v218, %v338
    %v340 = vpop.f32.mrb[0].mxu0
    %341 = vmatprep.mubr.f32.mxu0 0.0
    %v342 = vand.u32 %v136, 4294901760
    %343 = vmatmul.mubr.f32.gmra.mrb[0].mxu0 %v342
    %v344 = vpop.f32.mrb[0].mxu0
    %v345 = vadd.f32 %v228, %v344
    %v346 = vpop.f32.mrb[0].mxu0
    %347 = vdwg.mxu0
    %348 = vmatprep.subr.mxu0 0.0
    %v349 = vand.u32 %v53, 4294901760
    %v350 = vsub.f32 %v53, %v349
    %351 = vmatpush1.msra.mxu0 %v350
    %352 = vmatprep.subr.mxu0 0.0
    %v353 = vand.u32 %v54, 4294901760
    %v354 = vsub.f32 %v54, %v353
    %355 = vmatpush1.msra.mxu0 %v354
    %356 = vmatprep.subr.mxu0 0.0
    %v357 = vand.u32 %v55, 4294901760
    %v358 = vsub.f32 %v55, %v357
    %359 = vmatpush1.msra.mxu0 %v358
    %360 = vmatprep.subr.mxu0 0.0
    %v361 = vand.u32 %v56, 4294901760
    %v362 = vsub.f32 %v56, %v361
    %363 = vmatpush1.msra.mxu0 %v362
    %364 = vmatprep.subr.mxu0 0.0
    %v365 = vand.u32 %v57, 4294901760
    %v366 = vsub.f32 %v57, %v365
    %367 = vmatpush1.msra.mxu0 %v366
    %368 = vmatprep.subr.mxu0 0.0
    %v369 = vand.u32 %v58, 4294901760
    %v370 = vsub.f32 %v58, %v369
    %371 = vmatpush1.msra.mxu0 %v370
    %372 = vmatprep.subr.mxu0 0.0
    %v373 = vand.u32 %v59, 4294901760
    %v374 = vsub.f32 %v59, %v373
    %375 = vmatpush1.msra.mxu0 %v374
    %376 = vmatprep.subr.mxu0 0.0
    %v377 = vand.u32 %v60, 4294901760
    %v378 = vsub.f32 %v60, %v377
    %379 = vmatpush1.msra.mxu0 %v378
    %380 = vmatprep.subr.mxu0 0.0
    %381 = vmatpush1.msra.mxu0 0.0
    %382 = vmatprep.subr.mxu0 0.0
    %383 = vmatpush1.msra.mxu0 0.0
    %384 = vmatprep.subr.mxu0 0.0
    %385 = vmatpush1.msra.mxu0 0.0
    %386 = vmatprep.subr.mxu0 0.0
    %387 = vmatpush1.msra.mxu0 0.0
    %388 = vmatprep.subr.mxu0 0.0
    %389 = vmatpush1.msra.mxu0 0.0
    %390 = vmatprep.subr.mxu0 0.0
    %391 = vmatpush1.msra.mxu0 0.0
    %392 = vmatprep.subr.mxu0 0.0
    %393 = vmatpush1.msra.mxu0 0.0
    %394 = vmatprep.subr.mxu0 0.0
    %395 = vmatpush1.msra.mxu0 0.0
    %396 = vmatprep.subr.mxu0 0.0
    %397 = vmatpush1.msra.mxu0 0.0
    %398 = vmatprep.subr.mxu0 0.0
    %399 = vmatpush1.msra.mxu0 0.0
    %400 = vmatprep.subr.mxu0 0.0
    %401 = vmatpush1.msra.mxu0 0.0
    %402 = vmatprep.subr.mxu0 0.0
    %403 = vmatpush1.msra.mxu0 0.0
    %404 = vmatprep.subr.mxu0 0.0
    %405 = vmatpush1.msra.mxu0 0.0
    %406 = vmatprep.subr.mxu0 0.0
    %407 = vmatpush1.msra.mxu0 0.0
    %408 = vmatprep.subr.mxu0 0.0
    %409 = vmatpush1.msra.mxu0 0.0
    %410 = vmatprep.subr.mxu0 0.0
    %411 = vmatpush1.msra.mxu0 0.0
    %412 = vmatprep.subr.mxu0 0.0
    %413 = vmatpush1.msra.mxu0 0.0
    %414 = vmatprep.subr.mxu0 0.0
    %415 = vmatpush1.msra.mxu0 0.0
    %416 = vmatprep.subr.mxu0 0.0
    %417 = vmatpush1.msra.mxu0 0.0
    %418 = vmatprep.subr.mxu0 0.0
    %419 = vmatpush1.msra.mxu0 0.0
    %420 = vmatprep.subr.mxu0 0.0
    %421 = vmatpush1.msra.mxu0 0.0
    %422 = vmatprep.subr.mxu0 0.0
    %423 = vmatpush1.msra.mxu0 0.0
    %424 = vmatprep.subr.mxu0 0.0
    %425 = vmatpush1.msra.mxu0 0.0
    %426 = vmatprep.subr.mxu0 0.0
    %427 = vmatpush1.msra.mxu0 0.0
    %428 = vmatprep.mubr.f32.mxu0 0.0
    %v429 = vand.u32 %v133, 4294901760
    %v430 = vsub.f32 %v133, %v429
    %431 = vmatmul.mubr.f32.gmra.mrb[0].mxu0 %v430
    %v432 = vpop.f32.mrb[0].mxu0
    %v433 = vadd.f32 %v339, %v432
    %v434 = vpop.f32.mrb[0].mxu0
    %435 = vmatprep.mubr.f32.mxu0 0.0
    %v436 = vand.u32 %v136, 4294901760
    %v437 = vsub.f32 %v136, %v436
    %438 = vmatmul.mubr.f32.gmra.mrb[0].mxu0 %v437
    %v439 = vpop.f32.mrb[0].mxu0
    %v440 = vadd.f32 %v345, %v439
    %v441 = vpop.f32.mrb[0].mxu0
    %442 = vdwg.mxu0
    %443 = vmatprep.subr.mxu0 0.0
    %v444 = vand.u32 %v53, 4294901760
    %445 = vmatpush1.msra.mxu0 %v444
    %446 = vmatprep.subr.mxu0 0.0
    %v447 = vand.u32 %v54, 4294901760
    %448 = vmatpush1.msra.mxu0 %v447
    %449 = vmatprep.subr.mxu0 0.0
    %v450 = vand.u32 %v55, 4294901760
    %451 = vmatpush1.msra.mxu0 %v450
    %452 = vmatprep.subr.mxu0 0.0
    %v453 = vand.u32 %v56, 4294901760
    %454 = vmatpush1.msra.mxu0 %v453
    %455 = vmatprep.subr.mxu0 0.0
    %v456 = vand.u32 %v57, 4294901760
    %457 = vmatpush1.msra.mxu0 %v456
    %458 = vmatprep.subr.mxu0 0.0
    %v459 = vand.u32 %v58, 4294901760
    %460 = vmatpush1.msra.mxu0 %v459
    %461 = vmatprep.subr.mxu0 0.0
    %v462 = vand.u32 %v59, 4294901760
    %463 = vmatpush1.msra.mxu0 %v462
    %464 = vmatprep.subr.mxu0 0.0
    %v465 = vand.u32 %v60, 4294901760
    %466 = vmatpush1.msra.mxu0 %v465
    %467 = vmatprep.subr.mxu0 0.0
    %468 = vmatpush1.msra.mxu0 0.0
    %469 = vmatprep.subr.mxu0 0.0
    %470 = vmatpush1.msra.mxu0 0.0
    %471 = vmatprep.subr.mxu0 0.0
    %472 = vmatpush1.msra.mxu0 0.0
    %473 = vmatprep.subr.mxu0 0.0
    %474 = vmatpush1.msra.mxu0 0.0
    %475 = vmatprep.subr.mxu0 0.0
    %476 = vmatpush1.msra.mxu0 0.0
    %477 = vmatprep.subr.mxu0 0.0
    %478 = vmatpush1.msra.mxu0 0.0
    %479 = vmatprep.subr.mxu0 0.0
    %480 = vmatpush1.msra.mxu0 0.0
    %481 = vmatprep.subr.mxu0 0.0
    %482 = vmatpush1.msra.mxu0 0.0
    %483 = vmatprep.subr.mxu0 0.0
    %484 = vmatpush1.msra.mxu0 0.0
    %485 = vmatprep.subr.mxu0 0.0
    %486 = vmatpush1.msra.mxu0 0.0
    %487 = vmatprep.subr.mxu0 0.0
    %488 = vmatpush1.msra.mxu0 0.0
    %489 = vmatprep.subr.mxu0 0.0
    %490 = vmatpush1.msra.mxu0 0.0
    %491 = vmatprep.subr.mxu0 0.0
    %492 = vmatpush1.msra.mxu0 0.0
    %493 = vmatprep.subr.mxu0 0.0
    %494 = vmatpush1.msra.mxu0 0.0
    %495 = vmatprep.subr.mxu0 0.0
    %496 = vmatpush1.msra.mxu0 0.0
    %497 = vmatprep.subr.mxu0 0.0
    %498 = vmatpush1.msra.mxu0 0.0
    %499 = vmatprep.subr.mxu0 0.0
    %500 = vmatpush1.msra.mxu0 0.0
    %501 = vmatprep.subr.mxu0 0.0
    %502 = vmatpush1.msra.mxu0 0.0
    %503 = vmatprep.subr.mxu0 0.0
    %504 = vmatpush1.msra.mxu0 0.0
    %505 = vmatprep.subr.mxu0 0.0
    %506 = vmatpush1.msra.mxu0 0.0
    %507 = vmatprep.subr.mxu0 0.0
    %508 = vmatpush1.msra.mxu0 0.0
    %509 = vmatprep.subr.mxu0 0.0
    %510 = vmatpush1.msra.mxu0 0.0
    %511 = vmatprep.subr.mxu0 0.0
    %512 = vmatpush1.msra.mxu0 0.0
    %513 = vmatprep.subr.mxu0 0.0
    %514 = vmatpush1.msra.mxu0 0.0
    %515 = vmatprep.mubr.f32.mxu0 0.0
    %v516 = vand.u32 %v133, 4294901760
    %v517 = vsub.f32 %v133, %v516
    %v518 = vand.u32 %v517, 4294901760
    %519 = vmatmul.mubr.f32.gmra.mrb[0].mxu0 %v518
    %v520 = vpop.f32.mrb[0].mxu0
    %v521 = vadd.f32 %v433, %v520
    %v522 = vpop.f32.mrb[0].mxu0
    %523 = vmatprep.mubr.f32.mxu0 0.0
    %v524 = vand.u32 %v136, 4294901760
    %v525 = vsub.f32 %v136, %v524
    %v526 = vand.u32 %v525, 4294901760
    %527 = vmatmul.mubr.f32.gmra.mrb[0].mxu0 %v526
    %v528 = vpop.f32.mrb[0].mxu0
    %v529 = vadd.f32 %v440, %v528
    %v530 = vpop.f32.mrb[0].mxu0
    %531 = vdwg.mxu0
    %532 = vmatprep.subr.mxu0 0.0
    %v533 = vand.u32 %v53, 4294901760
    %v534 = vsub.f32 %v53, %v533
    %v535 = vand.u32 %v534, 4294901760
    %536 = vmatpush1.msra.mxu0 %v535
    %537 = vmatprep.subr.mxu0 0.0
    %v538 = vand.u32 %v54, 4294901760
    %v539 = vsub.f32 %v54, %v538
    %v540 = vand.u32 %v539, 4294901760
    %541 = vmatpush1.msra.mxu0 %v540
    %542 = vmatprep.subr.mxu0 0.0
    %v543 = vand.u32 %v55, 4294901760
    %v544 = vsub.f32 %v55, %v543
    %v545 = vand.u32 %v544, 4294901760
    %546 = vmatpush1.msra.mxu0 %v545
    %547 = vmatprep.subr.mxu0 0.0
    %v548 = vand.u32 %v56, 4294901760
    %v549 = vsub.f32 %v56, %v548
    %v550 = vand.u32 %v549, 4294901760
    %551 = vmatpush1.msra.mxu0 %v550
    %552 = vmatprep.subr.mxu0 0.0
    %v553 = vand.u32 %v57, 4294901760
    %v554 = vsub.f32 %v57, %v553
    %v555 = vand.u32 %v554, 4294901760
    %556 = vmatpush1.msra.mxu0 %v555
    %557 = vmatprep.subr.mxu0 0.0
    %v558 = vand.u32 %v58, 4294901760
    %v559 = vsub.f32 %v58, %v558
    %v560 = vand.u32 %v559, 4294901760
    %561 = vmatpush1.msra.mxu0 %v560
    %562 = vmatprep.subr.mxu0 0.0
    %v563 = vand.u32 %v59, 4294901760
    %v564 = vsub.f32 %v59, %v563
    %v565 = vand.u32 %v564, 4294901760
    %566 = vmatpush1.msra.mxu0 %v565
    %567 = vmatprep.subr.mxu0 0.0
    %v568 = vand.u32 %v60, 4294901760
    %v569 = vsub.f32 %v60, %v568
    %v570 = vand.u32 %v569, 4294901760
    %571 = vmatpush1.msra.mxu0 %v570
    %572 = vmatprep.subr.mxu0 0.0
    %573 = vmatpush1.msra.mxu0 0.0
    %574 = vmatprep.subr.mxu0 0.0
    %575 = vmatpush1.msra.mxu0 0.0
    %576 = vmatprep.subr.mxu0 0.0
    %577 = vmatpush1.msra.mxu0 0.0
    %578 = vmatprep.subr.mxu0 0.0
    %579 = vmatpush1.msra.mxu0 0.0
    %580 = vmatprep.subr.mxu0 0.0
    %581 = vmatpush1.msra.mxu0 0.0
    %582 = vmatprep.subr.mxu0 0.0
    %583 = vmatpush1.msra.mxu0 0.0
    %584 = vmatprep.subr.mxu0 0.0
    %585 = vmatpush1.msra.mxu0 0.0
    %586 = vmatprep.subr.mxu0 0.0
    %587 = vmatpush1.msra.mxu0 0.0
    %588 = vmatprep.subr.mxu0 0.0
    %589 = vmatpush1.msra.mxu0 0.0
    %590 = vmatprep.subr.mxu0 0.0
    %591 = vmatpush1.msra.mxu0 0.0
    %592 = vmatprep.subr.mxu0 0.0
    %593 = vmatpush1.msra.mxu0 0.0
    %594 = vmatprep.subr.mxu0 0.0
    %595 = vmatpush1.msra.mxu0 0.0
    %596 = vmatprep.subr.mxu0 0.0
    %597 = vmatpush1.msra.mxu0 0.0
    %598 = vmatprep.subr.mxu0 0.0
    %599 = vmatpush1.msra.mxu0 0.0
    %600 = vmatprep.subr.mxu0 0.0
    %601 = vmatpush1.msra.mxu0 0.0
    %602 = vmatprep.subr.mxu0 0.0
    %603 = vmatpush1.msra.mxu0 0.0
    %604 = vmatprep.subr.mxu0 0.0
    %605 = vmatpush1.msra.mxu0 0.0
    %606 = vmatprep.subr.mxu0 0.0
    %607 = vmatpush1.msra.mxu0 0.0
    %608 = vmatprep.subr.mxu0 0.0
    %609 = vmatpush1.msra.mxu0 0.0
    %610 = vmatprep.subr.mxu0 0.0
    %611 = vmatpush1.msra.mxu0 0.0
    %612 = vmatprep.subr.mxu0 0.0
    %613 = vmatpush1.msra.mxu0 0.0
    %614 = vmatprep.subr.mxu0 0.0
    %615 = vmatpush1.msra.mxu0 0.0
    %616 = vmatprep.subr.mxu0 0.0
    %617 = vmatpush1.msra.mxu0 0.0
    %618 = vmatprep.subr.mxu0 0.0
    %619 = vmatpush1.msra.mxu0 0.0
    %620 = vmatprep.mubr.f32.mxu0 0.0
    %v621 = vand.u32 %v133, 4294901760
    %622 = vmatmul.mubr.f32.gmra.mrb[0].mxu0 %v621
    %v623 = vpop.f32.mrb[0].mxu0
    %v624 = vadd.f32 %v521, %v623
    %v625 = vpop.f32.mrb[0].mxu0
    %626 = vmatprep.mubr.f32.mxu0 0.0
    %v627 = vand.u32 %v136, 4294901760
    %628 = vmatmul.mubr.f32.gmra.mrb[0].mxu0 %v627
    %v629 = vpop.f32.mrb[0].mxu0
    %v630 = vadd.f32 %v529, %v629
    %v631 = vpop.f32.mrb[0].mxu0
    %632 = vdwg.mxu0
    %633 = vmatprep.subr.mxu0 0.0
    %v634 = vand.u32 %v53, 4294901760
    %635 = vmatpush1.msra.mxu0 %v634
    %636 = vmatprep.subr.mxu0 0.0
    %v637 = vand.u32 %v54, 4294901760
    %638 = vmatpush1.msra.mxu0 %v637
    %639 = vmatprep.subr.mxu0 0.0
    %v640 = vand.u32 %v55, 4294901760
    %641 = vmatpush1.msra.mxu0 %v640
    %642 = vmatprep.subr.mxu0 0.0
    %v643 = vand.u32 %v56, 4294901760
    %644 = vmatpush1.msra.mxu0 %v643
    %645 = vmatprep.subr.mxu0 0.0
    %v646 = vand.u32 %v57, 4294901760
    %647 = vmatpush1.msra.mxu0 %v646
    %648 = vmatprep.subr.mxu0 0.0
    %v649 = vand.u32 %v58, 4294901760
    %650 = vmatpush1.msra.mxu0 %v649
    %651 = vmatprep.subr.mxu0 0.0
    %v652 = vand.u32 %v59, 4294901760
    %653 = vmatpush1.msra.mxu0 %v652
    %654 = vmatprep.subr.mxu0 0.0
    %v655 = vand.u32 %v60, 4294901760
    %656 = vmatpush1.msra.mxu0 %v655
    %657 = vmatprep.subr.mxu0 0.0
    %658 = vmatpush1.msra.mxu0 0.0
    %659 = vmatprep.subr.mxu0 0.0
    %660 = vmatpush1.msra.mxu0 0.0
    %661 = vmatprep.subr.mxu0 0.0
    %662 = vmatpush1.msra.mxu0 0.0
    %663 = vmatprep.subr.mxu0 0.0
    %664 = vmatpush1.msra.mxu0 0.0
    %665 = vmatprep.subr.mxu0 0.0
    %666 = vmatpush1.msra.mxu0 0.0
    %667 = vmatprep.subr.mxu0 0.0
    %668 = vmatpush1.msra.mxu0 0.0
    %669 = vmatprep.subr.mxu0 0.0
    %670 = vmatpush1.msra.mxu0 0.0
    %671 = vmatprep.subr.mxu0 0.0
    %672 = vmatpush1.msra.mxu0 0.0
    %673 = vmatprep.subr.mxu0 0.0
    %674 = vmatpush1.msra.mxu0 0.0
    %675 = vmatprep.subr.mxu0 0.0
    %676 = vmatpush1.msra.mxu0 0.0
    %677 = vmatprep.subr.mxu0 0.0
    %678 = vmatpush1.msra.mxu0 0.0
    %679 = vmatprep.subr.mxu0 0.0
    %680 = vmatpush1.msra.mxu0 0.0
    %681 = vmatprep.subr.mxu0 0.0
    %682 = vmatpush1.msra.mxu0 0.0
    %683 = vmatprep.subr.mxu0 0.0
    %684 = vmatpush1.msra.mxu0 0.0
    %685 = vmatprep.subr.mxu0 0.0
    %686 = vmatpush1.msra.mxu0 0.0
    %687 = vmatprep.subr.mxu0 0.0
    %688 = vmatpush1.msra.mxu0 0.0
    %689 = vmatprep.subr.mxu0 0.0
    %690 = vmatpush1.msra.mxu0 0.0
    %691 = vmatprep.subr.mxu0 0.0
    %692 = vmatpush1.msra.mxu0 0.0
    %693 = vmatprep.subr.mxu0 0.0
    %694 = vmatpush1.msra.mxu0 0.0
    %695 = vmatprep.subr.mxu0 0.0
    %696 = vmatpush1.msra.mxu0 0.0
    %697 = vmatprep.subr.mxu0 0.0
    %698 = vmatpush1.msra.mxu0 0.0
    %699 = vmatprep.subr.mxu0 0.0
    %700 = vmatpush1.msra.mxu0 0.0
    %701 = vmatprep.subr.mxu0 0.0
    %702 = vmatpush1.msra.mxu0 0.0
    %703 = vmatprep.subr.mxu0 0.0
    %704 = vmatpush1.msra.mxu0 0.0
    %705 = vmatprep.mubr.f32.mxu0 0.0
    %v706 = vand.u32 %v133, 4294901760
    %707 = vmatmul.mubr.f32.gmra.mrb[0].mxu0 %v706
    %v708 = vpop.f32.mrb[0].mxu0
    %v709 = vadd.f32 %v624, %v708
    %v710 = vpop.f32.mrb[0].mxu0
    %711 = vmatprep.mubr.f32.mxu0 0.0
    %v712 = vand.u32 %v136, 4294901760
    %713 = vmatmul.mubr.f32.gmra.mrb[0].mxu0 %v712
    %v714 = vpop.f32.mrb[0].mxu0
    %v715 = vadd.f32 %v630, %v714
    %v716 = vpop.f32.mrb[0].mxu0
    %717 = vdwg.mxu0
    %718 = vst [vmem:[#allocation8] sm:$0xff] %v709
    %719 = vst [vmem:[#allocation8 + $0x8] sm:$0xff] %v715
    // Predicated region
    $region26: #{tpu_custom_call.1} parent=1 // pred_check
      _
    $region27: #{tpu_custom_call.1} parent=1 // pred_check_branch
      %721 = sbr.rel (0) target = $region29
    $region28: #{tpu_custom_call.1} parent=1 // pred_region
      %s723 = ssub.s32 256, 256
      %724 = vsyncadd [#allocation4], %s723
      %s725 = sshll.u32 [#allocation8], 4
      %s726 = int_to_ptr.vmem [resolvable:$true] %s725
      %731 = dma.vmem_to_hbm [thread:$0]  %s726, 256, %s3, [#allocation4], 128, 128, 8
    $region29: #{tpu_custom_call.1} parent=1 // pred_fallthru
      _
    // Predicated region
    $region30: #{tpu_custom_call.1} parent=1 // pred_check
      _
    $region31: #{tpu_custom_call.1} parent=1 // pred_check_branch
      %733 = sbr.rel (0) target = $region33
    $region32: #{tpu_custom_call.1} parent=1 // pred_region
      %734 = dma.done [#allocation4], 256
    $region33: #{tpu_custom_call.1} parent=1 // pred_fallthru
      _
    %735 = vsyncpa [#allocation3], 1
    %736 = vsyncpa [#allocation6], 1
    %737 = vsyncpa [#allocation4], 1

</llo_original>
